<compile_context>
chip_gen: v7x
topology: tpu7x:2x2x1
jax: 0.10.0
libtpu: 0.0.40
codegen_flags: <defaults>
</compile_context>

<pallas_src>
import functools
import math

import numpy as np
import jax
import jax.numpy as jnp
from jax.experimental import pallas as pl
from jax.experimental.pallas import tpu as pltpu


# ------------------------------ Pallas kernels -------------------------------

def _conv_resize_kernel(x_ref, w_ref, b_ref, k_ref, o_ref, *, round_intermediate):
    """1x1 conv (input-dtype MXU operands, f32 acc) then fused bilinear resize.

    x_ref : (C_in, H*W)     channels on sublanes, flattened spatial on lanes
    w_ref : (TCO, C_in)     1x1-conv weight tile (input dtype)
    b_ref : (TCO, 1) f32    bias tile
    k_ref : (H*W, TSP) f32  column slice of kron(A_h, A_w)^T (both axes fused)
    o_ref : (TCO, TSP)      lane-dense output tile (flattened Ho*Wo)
    """
    h = jnp.dot(w_ref[...], x_ref[...], preferred_element_type=jnp.float32)
    h = h + b_ref[...].astype(jnp.float32)
    if round_intermediate:
        # 'down' + bf16: PyTorch rounds the conv output to bf16 before the
        # float() cast around the interpolation; reproduce that rounding.
        h = h.astype(o_ref.dtype).astype(jnp.float32)
    o_ref[...] = jnp.dot(h, k_ref[...],
                         preferred_element_type=jnp.float32).astype(o_ref.dtype)


def _resize_conv_kernel(x_ref, w_ref, b_ref, k_ref, o_ref):
    """'up' mode in the exact PyTorch op order (f32 resize, round to the I/O
    dtype, then 1x1 conv).  Used only when exact_bf16_up=True."""
    xr = jnp.dot(x_ref[...].astype(jnp.float32), k_ref[...],
                 preferred_element_type=jnp.float32).astype(x_ref.dtype)
    h = jnp.dot(w_ref[...], xr, preferred_element_type=jnp.float32)
    o_ref[...] = (h + b_ref[...].astype(jnp.float32)).astype(o_ref.dtype)


def _conv_only_kernel(x_ref, w_ref, b_ref, o_ref):
    """enabled=False path: interpolation is Identity, so just the 1x1 conv."""
    h = jnp.dot(w_ref[...], x_ref[...], preferred_element_type=jnp.float32)
    o_ref[...] = (h + b_ref[...].astype(jnp.float32)).astype(o_ref.dtype)


# --------------------------- parameters / helpers -----------------------------

def _interp_matrix(n_out, n_in):
    """1-D bilinear interpolation matrix, align_corners=True (PyTorch)."""
    a = np.zeros((n_out, n_in), dtype=np.float32)
    for i in range(n_out):
        s = 0.0 if n_out == 1 else i * (n_in - 1) / (n_out - 1)
        i0 = min(int(np.floor(s)), n_in - 1)
        i1 = min(i0 + 1, n_in - 1)
        w1 = s - i0
        a[i, i0] += 1.0 - w1
        a[i, i1] += w1
    return a


@functools.lru_cache(maxsize=None)
def _kron_resize_mat(h, w, ho, wo):
    """Cached fused resize operator kron(A_h, A_w)^T, shape (H*W, Ho*Wo).

    Right-multiplying the flattened (C, H*W) feature map by this matrix applies
    both bilinear-interpolation axes in a single lane-dense MXU matmul.
    """
    # TODO(synk): for very large spatial extents (H*W*Ho*Wo*4B far above VMEM /
    # HBM budgets) a tiled separable-resize kernel would be needed; all
    # Stable-Cascade UpDownBlock shapes are far below that.
    ah = _interp_matrix(ho, h)                        # (Ho, H)
    aw = _interp_matrix(wo, w)                        # (Wo, W)
    k = np.kron(ah, aw).T                             # (H*W, Ho*Wo)
    return jnp.asarray(np.ascontiguousarray(k, dtype=np.float32))


def _physical_vmem_bytes():
    try:
        return int(pltpu.get_tpu_info().vmem_capacity_bytes)
    except Exception:
        return 64 * 2**20      # conservative: v7x has 64 MiB per TensorCore


def _prefer_small_co_tile():
    try:
        return "v5" in jax.devices()[0].device_kind.lower()
    except Exception:
        return False


def _pick_co_tile(c_out, max_tile, step):
    """Output-channel tile <= max_tile that divides C_out, preferring multiples
    of `step` (8 for 4-byte dtypes, 16 for 2-byte sublane packing)."""
    if c_out <= max_tile:
        return c_out
    start = max_tile - (max_tile % step)
    for t in range(start, step - 1, -step):
        if c_out % t == 0:
            return t
    # TODO(synk): pathological C_out (large prime) — padding C_out to a
    # tileable size would beat a tiny divisor; not needed for this module.
    for t in range(max_tile, 0, -1):
        if c_out % t == 0:
            return t
    return c_out


def _pick_spatial_tile(sp_total, bytes_per_lane, lane_budget_bytes, force_split):
    """Lane (last-dim) tile of the output spatial axis.  Stays a multiple of
    128 (or the full extent); halves while the per-lane VMEM cost exceeds the
    budget; optionally splits once so both v7x TensorCores get work."""
    def can_halve(t):
        return t % 2 == 0 and (t // 2) % 128 == 0
    tsp = sp_total
    while bytes_per_lane * tsp > lane_budget_bytes and can_halve(tsp):
        tsp //= 2
    if force_split and tsp == sp_total and can_halve(tsp):
        tsp //= 2
    return tsp


# --------------------------------- wrapper ------------------------------------

def up_down_block_2d(x_nchw, weight, bias, mode, enabled=True,
                     exact_bf16_up=False):
    """Pallas implementation of UpDownBlock2d.forward.

    x_nchw: (N, C_in, H, W)   weight: (C_out, C_in, 1, 1)   bias: (C_out,)
    """
    assert mode in ("up", "down")
    N, C_in, H, W = x_nchw.shape
    C_out = weight.shape[0]
    dtype = x_nchw.dtype
    itemsize = x_nchw.dtype.itemsize

    sp_in = H * W
    if enabled:
        scale = 2.0 if mode == "up" else 0.5
        Ho, Wo = int(math.floor(H * scale)), int(math.floor(W * scale))
    else:
        Ho, Wo = H, W
    sp_out = Ho * Wo

    # Channels on sublanes, flattened spatial on lanes (free NCHW reshape).
    x2 = x_nchw.reshape(N, C_in, sp_in)
    w2 = weight.reshape(C_out, C_in).astype(dtype)    # conv in the input dtype
    b2 = bias.reshape(C_out, 1).astype(jnp.float32)

    # ---- tiling ---------------------------------------------------------------
    max_tco = 128 if _prefer_small_co_tile() else 256   # v5e: 128-wide MXU
    step = 8 if itemsize >= 4 else 16
    tco = _pick_co_tile(C_out, max_tco, step)
    nco = C_out // tco

    use_resize = enabled
    exact_up = use_resize and mode == "up" and exact_bf16_up

    if use_resize:
        lane_bytes = sp_in * 4 + tco * (itemsize + 4)    # K slice + out + f32 temp
    else:
        lane_bytes = C_in * itemsize + tco * (itemsize + 4)
    tsp = _pick_spatial_tile(sp_out, lane_bytes, 12 * 2**20,
                             force_split=(N * nco == 1))
    nsp = sp_out // tsp

    # ---- grid order: keep whichever of {x, weight} costs less to re-fetch
    # resident across the inner grid axis. --------------------------------------
    batch_major = (N - 1) * C_out * C_in <= (nco - 1) * N * C_in * sp_in
    if batch_major:
        grid = (N, nco, nsp)

        def _njs(g0, g1, g2):
            return g0, g1, g2
    else:
        grid = (nco, N, nsp)

        def _njs(g0, g1, g2):
            return g1, g0, g2

    def x_map(g0, g1, g2):
        n, _, s = _njs(g0, g1, g2)
        return (n, 0, 0) if use_resize else (n, 0, s)

    def w_map(g0, g1, g2):
        _, j, _ = _njs(g0, g1, g2)
        return (j, 0)

    def b_map(g0, g1, g2):
        _, j, _ = _njs(g0, g1, g2)
        return (j, 0)

    def k_map(g0, g1, g2):
        _, _, s = _njs(g0, g1, g2)
        return (0, s)

    def o_map(g0, g1, g2):
        return _njs(g0, g1, g2)

    # ---- kernel + specs -------------------------------------------------------
    if use_resize:
        k_mat = _kron_resize_mat(H, W, Ho, Wo)           # (H*W, Ho*Wo) f32
        in_specs = [
            pl.BlockSpec((None, C_in, sp_in), x_map),
            pl.BlockSpec((tco, C_in), w_map),
            pl.BlockSpec((tco, 1), b_map),
            pl.BlockSpec((sp_in, tsp), k_map),
        ]
        args = (x2, w2, b2, k_mat)
        if exact_up:
            kernel = _resize_conv_kernel
        else:
            kernel = functools.partial(
                _conv_resize_kernel,
                round_intermediate=(mode == "down" and dtype == jnp.bfloat16))
    else:
        in_specs = [
            pl.BlockSpec((None, C_in, tsp), x_map),
            pl.BlockSpec((tco, C_in), w_map),
            pl.BlockSpec((tco, 1), b_map),
        ]
        args = (x2, w2, b2)
        kernel = _conv_only_kernel

    # ---- VMEM budget (double-buffered blocks + in-kernel f32 temporaries) ----
    x_lanes = sp_in if use_resize else tsp
    est = (2 * C_in * x_lanes * itemsize          # x block
           + 2 * tco * C_in * itemsize            # weight tile
           + 2 * tco * 4                          # bias tile
           + 2 * tco * tsp * itemsize             # output tile
           + tco * tsp * 4)                       # f32 result temporary
    if use_resize:
        est += 2 * sp_in * tsp * 4                # kron column slice
        est += (C_in * tsp * (4 + itemsize)) if exact_up else (tco * sp_in * 4)
    phys_vmem = _physical_vmem_bytes()
    vmem_limit = int(min(max(32 * 2**20, 2 * est), (3 * phys_vmem) // 4))

    # ---- advisory cost estimate ----------------------------------------------
    if use_resize:
        if exact_up:
            flops = 2 * N * nco * (C_in * sp_in * sp_out + tco * C_in * sp_out)
        else:
            flops = 2 * N * (C_in * C_out * sp_in + C_out * sp_in * sp_out)
        bytes_accessed = (x2.size * itemsize + w2.size * itemsize + b2.size * 4
                          + k_mat.size * 4 + N * C_out * sp_out * itemsize)
    else:
        flops = 2 * N * C_in * C_out * sp_in
        bytes_accessed = (x2.size * itemsize + w2.size * itemsize + b2.size * 4
                          + N * C_out * sp_out * itemsize)

    out2 = pl.pallas_call(
        kernel,
        out_shape=jax.ShapeDtypeStruct((N, C_out, sp_out), dtype),
        grid_spec=pltpu.PrefetchScalarGridSpec(
            num_scalar_prefetch=0,
            grid=grid,
            in_specs=in_specs,
            out_specs=pl.BlockSpec((None, tco, tsp), o_map),
        ),
        compiler_params=pltpu.CompilerParams(
            dimension_semantics=("parallel", "parallel", "parallel"),
            vmem_limit_bytes=vmem_limit),
        cost_estimate=pl.CostEstimate(flops=flops, transcendentals=0,
                                      bytes_accessed=bytes_accessed),
    )(*args)
    return out2.reshape(N, C_out, Ho, Wo)


# -------------------------------- reference -----------------------------------

def _ref_forward(x_nchw, weight, bias, mode, enabled=True):
    """Pure-JAX reference implementing the original PyTorch op order (f32)."""
    C_out = weight.shape[0]
    wmat = weight.reshape(C_out, -1)

    def conv1x1(t):
        return jnp.einsum("oc,nchw->nohw", wmat, t) + bias[None, :, None, None]

    def interp(t, scale):
        Hi, Wi = t.shape[-2:]
        Ho, Wo = int(math.floor(Hi * scale)), int(math.floor(Wi * scale))
        ah = jnp.asarray(_interp_matrix(Ho, Hi))
        aw = jnp.asarray(_interp_matrix(Wo, Wi))
        return jnp.einsum("ih,jw,nchw->ncij", ah, aw, t)

    if not enabled:
        return conv1x1(x_nchw)
    if mode == "up":
        return conv1x1(interp(x_nchw, 2.0))
    return interp(conv1x1(x_nchw), 0.5)


# ----------------------------------- main --------------------------------------

if __name__ == "__main__":
    key = jax.random.PRNGKey(0)
    kx, kw, kb = jax.random.split(key, 3)

    N, C_in, C_out, H, W = 2, 4, 8, 16, 16
    x = jax.random.normal(kx, (N, C_in, H, W), dtype=jnp.float32)

    # Deterministic synthetic Conv2d(c_in, c_out, kernel_size=1) parameters.
    bound = 1.0 / math.sqrt(C_in)
    weight = jax.random.uniform(kw, (C_out, C_in, 1, 1),
                                minval=-bound, maxval=bound, dtype=jnp.float32)
    bias = jax.random.uniform(kb, (C_out,),
                              minval=-bound, maxval=bound, dtype=jnp.float32)

    ok = True

    # up / down, enabled=True (f32)
    for mode, (eh, ew) in (("up", (2 * H, 2 * W)), ("down", (H // 2, W // 2))):
        out = jax.block_until_ready(up_down_block_2d(x, weight, bias, mode))
        assert out.shape == (N, C_out, eh, ew), out.shape
        ref = _ref_forward(x, weight, bias, mode)
        ok &= bool(np.allclose(np.asarray(out), np.asarray(ref),
                               rtol=1e-4, atol=1e-4))

    # enabled=False (identity interpolation -> conv only)
    out = jax.block_until_ready(
        up_down_block_2d(x, weight, bias, "up", enabled=False))
    assert out.shape == (N, C_out, H, W), out.shape
    ref = _ref_forward(x, weight, bias, "up", enabled=False)
    ok &= bool(np.allclose(np.asarray(out), np.asarray(ref),
                           rtol=1e-4, atol=1e-4))

    # bf16 'up': default (conv-before-upsample) and exact PyTorch op order.
    xb = x.astype(jnp.bfloat16)
    refb = _ref_forward(x, weight, bias, "up")
    for exact in (False, True):
        outb = jax.block_until_ready(
            up_down_block_2d(xb, weight, bias, "up", exact_bf16_up=exact))
        assert outb.shape == (N, C_out, 2 * H, 2 * W), outb.shape
        ok &= bool(np.allclose(np.asarray(outb.astype(jnp.float32)),
                               np.asarray(refb), rtol=1e-1, atol=1e-1))

    # bf16 'down' (conv output rounded to bf16 before the f32 interpolation).
    outb = jax.block_until_ready(up_down_block_2d(xb, weight, bias, "down"))
    refd = _ref_forward(x, weight, bias, "down")
    ok &= bool(np.allclose(np.asarray(outb.astype(jnp.float32)),
                           np.asarray(refd), rtol=1e-1, atol=1e-1))

    if ok:
        print("KERNEL_OK")
    else:
        raise SystemExit("numerical mismatch vs. reference")
</pallas_src>

<mosaic_0001>
module attributes {stable_mosaic.version = 11 : i64} {
  func.func @_conv_resize_kernel(%arg0: i32, %arg1: i32, %arg2: i32, %arg3: memref<1x4x256xf32, #tpu.memory_space<vmem>>, %arg4: memref<8x4xf32, #tpu.memory_space<vmem>>, %arg5: memref<8x1xf32, #tpu.memory_space<vmem>>, %arg6: memref<256x1024xf32, #tpu.memory_space<vmem>>, %arg7: memref<1x8x1024xf32, #tpu.memory_space<vmem>>) attributes {dimension_semantics = [#tpu.dimension_semantics<parallel>, #tpu.dimension_semantics<parallel>, #tpu.dimension_semantics<parallel>], iteration_bounds = array<i64: 1, 2, 1>, scalar_prefetch = 0 : i64, scratch_operands = 0 : i64, tpu.core_type = #tpu.core_type<tc>, window_params = [{transform_indices = @transform_0, window_bounds = array<i64: 1, 4, 256>}, {transform_indices = @transform_1, window_bounds = array<i64: 8, 4>}, {transform_indices = @transform_2, window_bounds = array<i64: 8, 1>}, {transform_indices = @transform_3, window_bounds = array<i64: 256, 1024>}, {transform_indices = @transform_4, window_bounds = array<i64: 1, 8, 1024>}]} {
    %c0 = arith.constant 0 : index
    %c0_0 = arith.constant 0 : index
    %0 = vector.load %arg4[%c0, %c0_0] : memref<8x4xf32, #tpu.memory_space<vmem>>, vector<8x4xf32>
    %c0_1 = arith.constant 0 : index
    %c0_2 = arith.constant 0 : index
    %c0_3 = arith.constant 0 : index
    %1 = vector.load %arg3[%c0_1, %c0_2, %c0_3] : memref<1x4x256xf32, #tpu.memory_space<vmem>>, vector<1x4x256xf32>
    %2 = vector.shape_cast %1 : vector<1x4x256xf32> to vector<4x256xf32>
    %cst = arith.constant dense<0.000000e+00> : vector<8x256xf32>
    %3 = tpu.matmul %0, %2, %cst {dimension_numbers = #tpu.dot_dimension_numbers<[1], [0], [0], [1], [0, 0, 1, 1], [], []>} : vector<8x4xf32>, vector<4x256xf32>, vector<8x256xf32> -> vector<8x256xf32>
    %c0_4 = arith.constant 0 : index
    %c0_5 = arith.constant 0 : index
    %4 = vector.load %arg5[%c0_4, %c0_5] : memref<8x1xf32, #tpu.memory_space<vmem>>, vector<8x1xf32>
    %5 = vector.broadcast %4 : vector<8x1xf32> to vector<8x256xf32>
    %6 = arith.addf %3, %5 : vector<8x256xf32>
    %c0_6 = arith.constant 0 : index
    %c0_7 = arith.constant 0 : index
    %7 = vector.load %arg6[%c0_6, %c0_7] : memref<256x1024xf32, #tpu.memory_space<vmem>>, vector<256x1024xf32>
    %cst_8 = arith.constant dense<0.000000e+00> : vector<8x1024xf32>
    %8 = tpu.matmul %6, %7, %cst_8 {dimension_numbers = #tpu.dot_dimension_numbers<[1], [0], [0], [1], [0, 0, 1, 1], [], []>} : vector<8x256xf32>, vector<256x1024xf32>, vector<8x1024xf32> -> vector<8x1024xf32>
    %c0_9 = arith.constant 0 : index
    %c0_10 = arith.constant 0 : index
    %c0_11 = arith.constant 0 : index
    %9 = vector.load %arg7[%c0_9, %c0_10, %c0_11] : memref<1x8x1024xf32, #tpu.memory_space<vmem>>, vector<1x8x1024xf32>
    %10 = vector.shape_cast %9 : vector<1x8x1024xf32> to vector<8x1024xf32>
    %11 = vector.shape_cast %8 : vector<8x1024xf32> to vector<1x8x1024xf32>
    tpu.vector_store %arg7[%c0_9, %c0_10, %c0_11], %11 {strides = array<i32>} : memref<1x8x1024xf32, #tpu.memory_space<vmem>>, vector<1x8x1024xf32>,
    return
  }
  func.func @transform_0(%arg0: i32, %arg1: i32, %arg2: i32) -> (i32, i32, i32) {
    %c0_i32 = arith.constant 0 : i32
    %c0_i32_0 = arith.constant 0 : i32
    %c0_i32_1 = arith.constant 0 : i32
    return %arg1, %c0_i32, %c0_i32_0 : i32, i32, i32
  }
  func.func @transform_1(%arg0: i32, %arg1: i32, %arg2: i32) -> (i32, i32) {
    %c0_i32 = arith.constant 0 : i32
    %c0_i32_0 = arith.constant 0 : i32
    return %arg0, %c0_i32 : i32, i32
  }
  func.func @transform_2(%arg0: i32, %arg1: i32, %arg2: i32) -> (i32, i32) {
    %c0_i32 = arith.constant 0 : i32
    %c0_i32_0 = arith.constant 0 : i32
    return %arg0, %c0_i32 : i32, i32
  }
  func.func @transform_3(%arg0: i32, %arg1: i32, %arg2: i32) -> (i32, i32) {
    %c0_i32 = arith.constant 0 : i32
    %c0_i32_0 = arith.constant 0 : i32
    return %c0_i32, %arg2 : i32, i32
  }
  func.func @transform_4(%arg0: i32, %arg1: i32, %arg2: i32) -> (i32, i32, i32) {
    %c0_i32 = arith.constant 0 : i32
    return %arg1, %arg0, %arg2 : i32, i32, i32
  }
}

</mosaic_0001>

<llo_original>
// kernel: tpu_custom_call.1
$region0: #{tpu_custom_call.1}
  #allocation0 [shape = 'u32[]', space=smem, size = 0x4, offset = 0x4, fixed_abs, tag = 'smem constant byte address 0x4 - core index']
  #allocation1 [shape = 'u32[144,128]{1,0:T(1,128)}', space=vmem, size = 0x12000, scoped, tag = 'internal scratch']
  %s0 = inlined_call_operand.vmem [shape: f32[2,4,256], index: 0, kind: input, shape index: {}]
  %s1 = inlined_call_operand.vmem [shape: f32[8,4], index: 1, kind: input, shape index: {}]
  %s2 = inlined_call_operand.vmem [shape: f32[8,1], index: 2, kind: input, shape index: {}]
  %s3 = inlined_call_operand.hbm [shape: f32[256,1024], index: 3, kind: input, shape index: {}]
  %s4 = inlined_call_operand.hbm [shape: f32[2,8,1024], index: 4, kind: output, shape index: {}]
  %s5 = sld [smem:[#allocation0]]
  $region53: #{tpu_custom_call.1} parent=0
    _
  %s7 = ssub.s32 1, %s5
  %s8 = scalar_select 0, %s7, %s5
  $region1: #{tpu_custom_call.1} parent=0
    #allocation2 [shape = 'u8[1048576]{0}', space=vmem, size = 0x100000, scoped, tag = 'input window, operand 3, single buffered']
    #allocation3 [shape = 's32[2]{0}', space=sflag, size = 0x8, scoped, tag = 'scoped memory for tpu_custom_call.1']
    #allocation4 [shape = 's32[2]{0}', space=sflag, size = 0x8, scoped, tag = 'scoped memory for tpu_custom_call.1']
    #allocation5 [shape = 'u8[65536]{0}', space=vmem, size = 0x10000, scoped, tag = 'output window, operand 0']
    %9 = vsyncpa [#allocation3], 0
    %10 = vsyncpa [#allocation4], 0
    %s11 = scalar_lea.sflag [#allocation4], 1
    %12 = vsyncpa %s11, 0
    loop: start=0, step=1, limit=4
    $region2: #{tpu_custom_call.1} parent=1 // loop_pre_header
      _
    $region3: #{tpu_custom_call.1} parent=1 // loop_header
      %s14 = sphi 0, %s18
      %p15 = scmp.ge.s32.totalorder %s14, 4
      %s21 = sphi 0, %s40
      %s22 = sphi 0, %s36
      %s23 = sphi 0, %s32
      %s24 = sphi 0, %s21
      %s25 = sphi 0, %s22
      %s26 = sphi 0, %s23
      %s27 = sphi 0, %s24
      %s28 = sphi 0, %s25
      %s29 = sphi 0, %s26
      %s43 = sphi 0, %s45
      %s46 = sphi 0, %s43
      %s47 = sphi 0, %s46
      %s63 = sphi 0, %s47
      %s69 = sphi 0, %s71
      %s72 = sphi 0, %s69
      %s73 = sphi 0, %s72
      %s89 = sphi 0, %s73
      %s95 = sphi 0, %s97
      %s98 = sphi 0, %s95
      %s99 = sphi 0, %s98
      %s115 = sphi 0, %s99
      %s121 = sphi 0, %s123
      %s124 = sphi 0, %s121
      %s125 = sphi 0, %s124
      %s141 = sphi 0, %s125
      %s151 = sphi 0, %s153
      %s154 = sphi 0, %s151
      %s155 = sphi 0, %s154
      %s171 = sphi 0, %s155
    $region4: #{tpu_custom_call.1} parent=1 // loop_header_branch
      %17 = sbr.rel (%p15) target = $region8
    $region5: #{tpu_custom_call.1} parent=1 // loop_body
      %s19 = ssub.s32 %s14, 1
      %s20 = ssub.s32 %s14, 2
      %s30 = sadd.s32 1, %s23
      %p31 = scmp.ge.s32.totalorder %s30, 1
      %s32 = scalar_select %p31, 0, %s30
      %s33 = sadd.s32 1, %s22
      %s34 = scalar_select %p31, %s33, %s22
      %p35 = scmp.ge.s32.totalorder %s34, 2
      %s36 = scalar_select %p35, 0, %s34
      %s37 = sadd.s32 1, %s21
      %s38 = scalar_select %p35, %s37, %s21
      %p39 = scmp.ge.s32.totalorder %s38, 1
      %s40 = scalar_select %p39, 0, %s38
      %s41 = ssub.s32 %s22, %s36
      %p42 = scmp.eq.s32.totalorder %s41, 0
      %s44 = sadd.s32 %s43, 1
      %s45 = scalar_select %p42, %s43, %s44
      %p48 = pneg %p42
      %p49 = scmp.eq.s32.totalorder %s14, 1
      %p50 = por %p48, %p49
      %p51 = scmp.ne.s32.totalorder %s43, %s46
      %p52 = scmp.eq.s32.totalorder %s14, 0
      %p53 = por %p51, %p52
      %p54 = scmp.ne.s32.totalorder %s43, %s46
      %p55 = scmp.eq.s32.totalorder %s19, 1
      %p56 = por %p54, %p55
      %p57 = scmp.ne.s32.totalorder %s46, %s47
      %p58 = scmp.eq.s32.totalorder %s19, 0
      %p59 = por %p57, %p58
      %p60 = scmp.ne.s32.totalorder %s46, %s47
      %p61 = scmp.eq.s32.totalorder %s20, 1
      %p62 = por %p60, %p61
      %p64 = scmp.ne.s32.totalorder %s47, %s63
      %p65 = scmp.eq.s32.totalorder %s20, 0
      %p66 = por %p64, %p65
      %s67 = ssub.s32 %s21, %s40
      %p68 = scmp.eq.s32.totalorder %s67, 0
      %s70 = sadd.s32 %s69, 1
      %s71 = scalar_select %p68, %s69, %s70
      %p74 = pneg %p68
      %p75 = scmp.eq.s32.totalorder %s14, 1
      %p76 = por %p74, %p75
      %p77 = scmp.ne.s32.totalorder %s69, %s72
      %p78 = scmp.eq.s32.totalorder %s14, 0
      %p79 = por %p77, %p78
      %p80 = scmp.ne.s32.totalorder %s69, %s72
      %p81 = scmp.eq.s32.totalorder %s19, 1
      %p82 = por %p80, %p81
      %p83 = scmp.ne.s32.totalorder %s72, %s73
      %p84 = scmp.eq.s32.totalorder %s19, 0
      %p85 = por %p83, %p84
      %p86 = scmp.ne.s32.totalorder %s72, %s73
      %p87 = scmp.eq.s32.totalorder %s20, 1
      %p88 = por %p86, %p87
      %p90 = scmp.ne.s32.totalorder %s73, %s89
      %p91 = scmp.eq.s32.totalorder %s20, 0
      %p92 = por %p90, %p91
      %s93 = ssub.s32 %s21, %s40
      %p94 = scmp.eq.s32.totalorder %s93, 0
      %s96 = sadd.s32 %s95, 1
      %s97 = scalar_select %p94, %s95, %s96
      %p100 = pneg %p94
      %p101 = scmp.eq.s32.totalorder %s14, 1
      %p102 = por %p100, %p101
      %p103 = scmp.ne.s32.totalorder %s95, %s98
      %p104 = scmp.eq.s32.totalorder %s14, 0
      %p105 = por %p103, %p104
      %p106 = scmp.ne.s32.totalorder %s95, %s98
      %p107 = scmp.eq.s32.totalorder %s19, 1
      %p108 = por %p106, %p107
      %p109 = scmp.ne.s32.totalorder %s98, %s99
      %p110 = scmp.eq.s32.totalorder %s19, 0
      %p111 = por %p109, %p110
      %p112 = scmp.ne.s32.totalorder %s98, %s99
      %p113 = scmp.eq.s32.totalorder %s20, 1
      %p114 = por %p112, %p113
      %p116 = scmp.ne.s32.totalorder %s99, %s115
      %p117 = scmp.eq.s32.totalorder %s20, 0
      %p118 = por %p116, %p117
      %s119 = ssub.s32 %s23, %s32
      %p120 = scmp.eq.s32.totalorder %s119, 0
      %s122 = sadd.s32 %s121, 1
      %s123 = scalar_select %p120, %s121, %s122
      %p126 = pneg %p120
      %p127 = scmp.eq.s32.totalorder %s14, 1
      %p128 = por %p126, %p127
      %p129 = scmp.ne.s32.totalorder %s121, %s124
      %p130 = scmp.eq.s32.totalorder %s14, 0
      %p131 = por %p129, %p130
      %p132 = scmp.ne.s32.totalorder %s121, %s124
      %p133 = scmp.eq.s32.totalorder %s19, 1
      %p134 = por %p132, %p133
      %p135 = scmp.ne.s32.totalorder %s124, %s125
      %p136 = scmp.eq.s32.totalorder %s19, 0
      %p137 = por %p135, %p136
      %p138 = scmp.ne.s32.totalorder %s124, %s125
      %p139 = scmp.eq.s32.totalorder %s20, 1
      %p140 = por %p138, %p139
      %p142 = scmp.ne.s32.totalorder %s125, %s141
      %p143 = scmp.eq.s32.totalorder %s20, 0
      %p144 = por %p142, %p143
      %s145 = ssub.s32 %s22, %s36
      %s146 = ssub.s32 %s21, %s40
      %s147 = sor.u32 %s145, %s146
      %s148 = ssub.s32 %s23, %s32
      %s149 = sor.u32 %s147, %s148
      %p150 = scmp.eq.s32.totalorder %s149, 0
      %s152 = sadd.s32 %s151, 1
      %s153 = scalar_select %p150, %s151, %s152
      %p156 = pneg %p150
      %p157 = scmp.eq.s32.totalorder %s14, 1
      %p158 = por %p156, %p157
      %p159 = scmp.ne.s32.totalorder %s151, %s154
      %p160 = scmp.eq.s32.totalorder %s14, 0
      %p161 = por %p159, %p160
      %p162 = scmp.ne.s32.totalorder %s151, %s154
      %p163 = scmp.eq.s32.totalorder %s19, 1
      %p164 = por %p162, %p163
      %p165 = scmp.ne.s32.totalorder %s154, %s155
      %p166 = scmp.eq.s32.totalorder %s19, 0
      %p167 = por %p165, %p166
      %p168 = scmp.ne.s32.totalorder %s154, %s155
      %p169 = scmp.eq.s32.totalorder %s20, 1
      %p170 = por %p168, %p169
      %p172 = scmp.ne.s32.totalorder %s155, %s171
      %p173 = scmp.eq.s32.totalorder %s20, 0
      %p174 = por %p172, %p173
      %p175 = scmp.le.s32.totalorder 1, %s14
      %p176 = scmp.lt.s32.totalorder %s14, 3
      %p177 = pnand %p175, %p176
      %p178 = pneg %p177
      // Predicated region
      $region9: #{tpu_custom_call.1} parent=5 // pred_check
        _
      $region10: #{tpu_custom_call.1} parent=5 // pred_check_branch
        %180 = sbr.rel (%p177) target = $region12
      $region11: #{tpu_custom_call.1} parent=5 // pred_region
        %s181 = ssub.s32 %s14, 1
        // Predicated region
        $region13: #{tpu_custom_call.1} parent=11 // pred_check
          %p182 = pneg %p85
        $region14: #{tpu_custom_call.1} parent=11 // pred_check_branch
          %184 = sbr.rel (%p182) target = $region16
        $region15: #{tpu_custom_call.1} parent=11 // pred_region
          %p185 = scmp.lt.s32.totalorder %s24, 0
          %s186 = scalar_select %p185, %s24, 0
          %s187 = smul.addr %s186, 8
          %s188 = scalar_lea.vmem %s1, %s187
        $region16: #{tpu_custom_call.1} parent=11 // pred_fallthru
          _
        // Predicated region
        $region17: #{tpu_custom_call.1} parent=11 // pred_check
          %p189 = pneg %p111
        $region18: #{tpu_custom_call.1} parent=11 // pred_check_branch
          %191 = sbr.rel (%p189) target = $region20
        $region19: #{tpu_custom_call.1} parent=11 // pred_region
          %p192 = scmp.lt.s32.totalorder %s24, 0
          %s193 = scalar_select %p192, %s24, 0
          %s194 = smul.addr %s193, 8
          %s195 = scalar_lea.vmem %s2, %s194
        $region20: #{tpu_custom_call.1} parent=11 // pred_fallthru
          _
        // Predicated region
        $region21: #{tpu_custom_call.1} parent=11 // pred_check
          %p196 = pneg %p137
        $region22: #{tpu_custom_call.1} parent=11 // pred_check_branch
          %198 = sbr.rel (%p196) target = $region24
        $region23: #{tpu_custom_call.1} parent=11 // pred_region
          %s199 = smul.u32 8, %s26
          %s201 = ssub.s32 32768, 32768
          %202 = vsyncadd [#allocation3], %s201
          %s203 = smul.addr %s199, 128
          %s204 = scalar_lea.hbm %s3, %s203
          %s205 = sshll.u32 [#allocation2], 4
          %s206 = int_to_ptr.vmem [resolvable:$true] %s205
          %211 = dma.hbm_to_vmem [thread:$0]  %s204, 32768, %s206, [#allocation3], 1024, 1024, 64
        $region24: #{tpu_custom_call.1} parent=11 // pred_fallthru
          _
      $region12: #{tpu_custom_call.1} parent=5 // pred_fallthru
        _
      %p212 = scmp.lt.s32.totalorder %s14, 2
      // Predicated region
      $region25: #{tpu_custom_call.1} parent=5 // pred_check
        %p213 = pneg %p212
      $region26: #{tpu_custom_call.1} parent=5 // pred_check_branch
        %215 = sbr.rel (%p213) target = $region28
      $region27: #{tpu_custom_call.1} parent=5 // pred_region
        // Predicated region
        $region29: #{tpu_custom_call.1} parent=27 // pred_check
          %p216 = pneg %p53
        $region30: #{tpu_custom_call.1} parent=27 // pred_check_branch
          %218 = sbr.rel (%p216) target = $region32
        $region31: #{tpu_custom_call.1} parent=27 // pred_region
          %p219 = scmp.lt.s32.totalorder %s22, 1
          %s220 = scalar_select %p219, %s22, 1
          %s221 = smul.addr %s220, 2
          %s222 = smul.addr %s221, 4
          %s223 = scalar_lea.vmem %s0, %s222
        $region32: #{tpu_custom_call.1} parent=27 // pred_fallthru
          _
      $region28: #{tpu_custom_call.1} parent=5 // pred_fallthru
        _
      %p224 = scmp.le.s32.totalorder 1, %s14
      %p225 = scmp.lt.s32.totalorder %s14, 3
      %p226 = pnand %p224, %p225
      %p227 = pneg %p226
      // Predicated region
      $region33: #{tpu_custom_call.1} parent=5 // pred_check
        _
      $region34: #{tpu_custom_call.1} parent=5 // pred_check_branch
        %229 = sbr.rel (%p226) target = $region36
      $region35: #{tpu_custom_call.1} parent=5 // pred_region
        %s230 = ssub.s32 %s14, 1
        // Predicated region
        $region37: #{tpu_custom_call.1} parent=35 // pred_check
          %p231 = pneg %p137
        $region38: #{tpu_custom_call.1} parent=35 // pred_check_branch
          %233 = sbr.rel (%p231) target = $region40
        $region39: #{tpu_custom_call.1} parent=35 // pred_region
          %234 = dma.done [#allocation3], 32768
        $region40: #{tpu_custom_call.1} parent=35 // pred_fallthru
          _
        %p235 = scmp.lt.s32.totalorder %s25, 1
        %s236 = scalar_select %p235, %s25, 1
        %s237 = smul.addr %s236, 2
        %s238 = smul.addr %s237, 4
        %s239 = scalar_lea.vmem %s0, %s238
        %p240 = pneg %p59
        %p241 = pneg %p56
        %p242 = scmp.lt.s32.totalorder %s24, 0
        %s243 = scalar_select %p242, %s24, 0
        %s244 = smul.addr %s243, 8
        %s245 = scalar_lea.vmem %s1, %s244
        %p246 = pneg %p85
        %p247 = pneg %p82
        %p248 = scmp.lt.s32.totalorder %s24, 0
        %s249 = scalar_select %p248, %s24, 0
        %s250 = smul.addr %s249, 8
        %s251 = scalar_lea.vmem %s2, %s250
        %p252 = pneg %p111
        %p253 = pneg %p108
        %p254 = pneg %p137
        %p255 = pneg %p134
        %p256 = pneg %p167
        %p257 = pneg %p164
        %s258 = sand.u32 %s154, 1
        %s259 = scalar_lea.sflag [#allocation4], %s258
        %s260 = sand.u32 %s154, 1
        %s261 = smul.addr %s260, 64
        %s262 = scalar_lea.vmem [#allocation5], %s261
        %p263 = scmp.lt.s32.totalorder %s25, 1
        %s264 = scalar_select %p263, %s25, 1
        %s265 = smul.addr %s264, 2
        %s266 = smul.addr %s265, 4
        %s267 = scalar_lea.vmem %s0, %s266
        %p268 = scmp.lt.s32.totalorder %s24, 0
        %s269 = scalar_select %p268, %s24, 0
        %s270 = smul.addr %s269, 8
        %s271 = scalar_lea.vmem %s1, %s270
        %p272 = scmp.lt.s32.totalorder %s24, 0
        %s273 = scalar_select %p272, %s24, 0
        %s274 = smul.addr %s273, 8
        %s275 = scalar_lea.vmem %s2, %s274
        %s276 = smul.u32 8, %s26
        %s277 = smul.u32 8, %s26
        %v278 = vld [vmem:[%s271] sm:$0xff]
        %v279 = vld [vmem:[%s267] sm:$0xff]
        %v280 = vld [vmem:[%s275] sm:$0xff]
        %282 = vset.pattern.permute.xlu0 0
        %283 = vperm.xlu0 %282, %v280
        %v284 = vpop.permute.xlu0 %283
        %v287 = vcombine.high %v279, %v279
        %vm288 = vcmask 31744
        %v290 = vsel %vm288, %v278, 0
        %vm292 = vcmask 1043456
        %v293 = vsel %vm292, %v279, 0
        %v295 = vsel %vm292, %v287, 0
        %297 = vmatprep.subr.mxu0 %v295
        %298 = vmatpush1.msra.mxu0 %v293
        %299 = vmatprep.subr.mxu0 0.0
        %300 = vmatpush1.msra.mxu0 0.0
        %301 = vmatprep.subr.mxu0 0.0
        %302 = vmatpush1.msra.mxu0 0.0
        %303 = vmatprep.subr.mxu0 0.0
        %304 = vmatpush1.msra.mxu0 0.0
        %305 = vmatprep.subr.mxu0 0.0
        %306 = vmatpush1.msra.mxu0 0.0
        %307 = vmatprep.subr.mxu0 0.0
        %308 = vmatpush1.msra.mxu0 0.0
        %309 = vmatprep.subr.mxu0 0.0
        %310 = vmatpush1.msra.mxu0 0.0
        %311 = vmatprep.subr.mxu0 0.0
        %312 = vmatpush1.msra.mxu0 0.0
        %313 = vmatprep.subr.mxu0 0.0
        %314 = vmatpush1.msra.mxu0 0.0
        %315 = vmatprep.subr.mxu0 0.0
        %316 = vmatpush1.msra.mxu0 0.0
        %317 = vmatprep.subr.mxu0 0.0
        %318 = vmatpush1.msra.mxu0 0.0
        %319 = vmatprep.subr.mxu0 0.0
        %320 = vmatpush1.msra.mxu0 0.0
        %321 = vmatprep.subr.mxu0 0.0
        %322 = vmatpush1.msra.mxu0 0.0
        %323 = vmatprep.subr.mxu0 0.0
        %324 = vmatpush1.msra.mxu0 0.0
        %325 = vmatprep.subr.mxu0 0.0
        %326 = vmatpush1.msra.mxu0 0.0
        %327 = vmatprep.subr.mxu0 0.0
        %328 = vmatpush1.msra.mxu0 0.0
        %329 = vmatprep.subr.mxu0 0.0
        %330 = vmatpush1.msra.mxu0 0.0
        %331 = vmatprep.subr.mxu0 0.0
        %332 = vmatpush1.msra.mxu0 0.0
        %333 = vmatprep.subr.mxu0 0.0
        %334 = vmatpush1.msra.mxu0 0.0
        %335 = vmatprep.subr.mxu0 0.0
        %336 = vmatpush1.msra.mxu0 0.0
        %337 = vmatprep.subr.mxu0 0.0
        %338 = vmatpush1.msra.mxu0 0.0
        %339 = vmatprep.subr.mxu0 0.0
        %340 = vmatpush1.msra.mxu0 0.0
        %341 = vmatprep.subr.mxu0 0.0
        %342 = vmatpush1.msra.mxu0 0.0
        %343 = vmatprep.subr.mxu0 0.0
        %344 = vmatpush1.msra.mxu0 0.0
        %345 = vmatprep.subr.mxu0 0.0
        %346 = vmatpush1.msra.mxu0 0.0
        %347 = vmatprep.subr.mxu0 0.0
        %348 = vmatpush1.msra.mxu0 0.0
        %349 = vmatprep.subr.mxu0 0.0
        %350 = vmatpush1.msra.mxu0 0.0
        %351 = vmatprep.subr.mxu0 0.0
        %352 = vmatpush1.msra.mxu0 0.0
        %353 = vmatprep.subr.mxu0 0.0
        %354 = vmatpush1.msra.mxu0 0.0
        %355 = vmatprep.subr.mxu0 0.0
        %356 = vmatpush1.msra.mxu0 0.0
        %357 = vmatprep.subr.mxu0 0.0
        %358 = vmatpush1.msra.mxu0 0.0
        %359 = vmatprep.subr.mxu0 0.0
        %360 = vmatpush1.msra.mxu0 0.0
        %361 = vmatprep.mubr.f32.mxu0 0.0
        %362 = vmatmul.mubr.f32.gmra.mrb[0].mxu0 %v290
        %v363 = vpop.f32.mrb[0].mxu0
        %v364 = vadd.f32 %v284, %v363
        %v365 = vpop.f32.mrb[0].mxu0
        %v366 = vadd.f32 %v284, %v365
        %367 = vdwg.mxu0
        %v368 = vld [vmem:[#allocation2] sm:$0xff]
        %v369 = vld [vmem:[#allocation2 + $0x8] sm:$0xff]
        %v370 = vld [vmem:[#allocation2 + $0x10] sm:$0xff]
        %v371 = vld [vmem:[#allocation2 + $0x18] sm:$0xff]
        %v372 = vld [vmem:[#allocation2 + $0x20] sm:$0xff]
        %v373 = vld [vmem:[#allocation2 + $0x28] sm:$0xff]
        %v374 = vld [vmem:[#allocation2 + $0x30] sm:$0xff]
        %v375 = vld [vmem:[#allocation2 + $0x38] sm:$0xff]
        %v376 = vld [vmem:[#allocation2 + $0x40] sm:$0xff]
        %v377 = vld [vmem:[#allocation2 + $0x48] sm:$0xff]
        %v378 = vld [vmem:[#allocation2 + $0x50] sm:$0xff]
        %v379 = vld [vmem:[#allocation2 + $0x58] sm:$0xff]
        %v380 = vld [vmem:[#allocation2 + $0x60] sm:$0xff]
        %v381 = vld [vmem:[#allocation2 + $0x68] sm:$0xff]
        %v382 = vld [vmem:[#allocation2 + $0x70] sm:$0xff]
        %v383 = vld [vmem:[#allocation2 + $0x78] sm:$0xff]
        %v384 = vld [vmem:[#allocation2 + $0x80] sm:$0xff]
        %v385 = vld [vmem:[#allocation2 + $0x88] sm:$0xff]
        %v386 = vld [vmem:[#allocation2 + $0x90] sm:$0xff]
        %v387 = vld [vmem:[#allocation2 + $0x98] sm:$0xff]
        %v388 = vld [vmem:[#allocation2 + $0xa0] sm:$0xff]
        %v389 = vld [vmem:[#allocation2 + $0xa8] sm:$0xff]
        %v390 = vld [vmem:[#allocation2 + $0xb0] sm:$0xff]
        %v391 = vld [vmem:[#allocation2 + $0xb8] sm:$0xff]
        %v392 = vld [vmem:[#allocation2 + $0xc0] sm:$0xff]
        %v393 = vld [vmem:[#allocation2 + $0xc8] sm:$0xff]
        %v394 = vld [vmem:[#allocation2 + $0xd0] sm:$0xff]
        %v395 = vld [vmem:[#allocation2 + $0xd8] sm:$0xff]
        %v396 = vld [vmem:[#allocation2 + $0xe0] sm:$0xff]
        %v397 = vld [vmem:[#allocation2 + $0xe8] sm:$0xff]
        %v398 = vld [vmem:[#allocation2 + $0xf0] sm:$0xff]
        %v399 = vld [vmem:[#allocation2 + $0xf8] sm:$0xff]
        %v400 = vld [vmem:[#allocation2 + $0x100] sm:$0xff]
        %v401 = vld [vmem:[#allocation2 + $0x108] sm:$0xff]
        %v402 = vld [vmem:[#allocation2 + $0x110] sm:$0xff]
        %v403 = vld [vmem:[#allocation2 + $0x118] sm:$0xff]
        %v404 = vld [vmem:[#allocation2 + $0x120] sm:$0xff]
        %v405 = vld [vmem:[#allocation2 + $0x128] sm:$0xff]
        %v406 = vld [vmem:[#allocation2 + $0x130] sm:$0xff]
        %v407 = vld [vmem:[#allocation2 + $0x138] sm:$0xff]
        %v408 = vld [vmem:[#allocation2 + $0x140] sm:$0xff]
        %v409 = vld [vmem:[#allocation2 + $0x148] sm:$0xff]
        %v410 = vld [vmem:[#allocation2 + $0x150] sm:$0xff]
        %v411 = vld [vmem:[#allocation2 + $0x158] sm:$0xff]
        %v412 = vld [vmem:[#allocation2 + $0x160] sm:$0xff]
        %v413 = vld [vmem:[#allocation2 + $0x168] sm:$0xff]
        %v414 = vld [vmem:[#allocation2 + $0x170] sm:$0xff]
        %v415 = vld [vmem:[#allocation2 + $0x178] sm:$0xff]
        %v416 = vld [vmem:[#allocation2 + $0x180] sm:$0xff]
        %v417 = vld [vmem:[#allocation2 + $0x188] sm:$0xff]
        %v418 = vld [vmem:[#allocation2 + $0x190] sm:$0xff]
        %v419 = vld [vmem:[#allocation2 + $0x198] sm:$0xff]
        %v420 = vld [vmem:[#allocation2 + $0x1a0] sm:$0xff]
        %v421 = vld [vmem:[#allocation2 + $0x1a8] sm:$0xff]
        %v422 = vld [vmem:[#allocation2 + $0x1b0] sm:$0xff]
        %v423 = vld [vmem:[#allocation2 + $0x1b8] sm:$0xff]
        %v424 = vld [vmem:[#allocation2 + $0x1c0] sm:$0xff]
        %v425 = vld [vmem:[#allocation2 + $0x1c8] sm:$0xff]
        %v426 = vld [vmem:[#allocation2 + $0x1d0] sm:$0xff]
        %v427 = vld [vmem:[#allocation2 + $0x1d8] sm:$0xff]
        %v428 = vld [vmem:[#allocation2 + $0x1e0] sm:$0xff]
        %v429 = vld [vmem:[#allocation2 + $0x1e8] sm:$0xff]
        %v430 = vld [vmem:[#allocation2 + $0x1f0] sm:$0xff]
        %v431 = vld [vmem:[#allocation2 + $0x1f8] sm:$0xff]
        %v432 = vld [vmem:[#allocation2 + $0x200] sm:$0xff]
        %v433 = vld [vmem:[#allocation2 + $0x208] sm:$0xff]
        %v434 = vld [vmem:[#allocation2 + $0x210] sm:$0xff]
        %v435 = vld [vmem:[#allocation2 + $0x218] sm:$0xff]
        %v436 = vld [vmem:[#allocation2 + $0x220] sm:$0xff]
        %v437 = vld [vmem:[#allocation2 + $0x228] sm:$0xff]
        %v438 = vld [vmem:[#allocation2 + $0x230] sm:$0xff]
        %v439 = vld [vmem:[#allocation2 + $0x238] sm:$0xff]
        %v440 = vld [vmem:[#allocation2 + $0x240] sm:$0xff]
        %v441 = vld [vmem:[#allocation2 + $0x248] sm:$0xff]
        %v442 = vld [vmem:[#allocation2 + $0x250] sm:$0xff]
        %v443 = vld [vmem:[#allocation2 + $0x258] sm:$0xff]
        %v444 = vld [vmem:[#allocation2 + $0x260] sm:$0xff]
        %v445 = vld [vmem:[#allocation2 + $0x268] sm:$0xff]
        %v446 = vld [vmem:[#allocation2 + $0x270] sm:$0xff]
        %v447 = vld [vmem:[#allocation2 + $0x278] sm:$0xff]
        %v448 = vld [vmem:[#allocation2 + $0x280] sm:$0xff]
        %v449 = vld [vmem:[#allocation2 + $0x288] sm:$0xff]
        %v450 = vld [vmem:[#allocation2 + $0x290] sm:$0xff]
        %v451 = vld [vmem:[#allocation2 + $0x298] sm:$0xff]
        %v452 = vld [vmem:[#allocation2 + $0x2a0] sm:$0xff]
        %v453 = vld [vmem:[#allocation2 + $0x2a8] sm:$0xff]
        %v454 = vld [vmem:[#allocation2 + $0x2b0] sm:$0xff]
        %v455 = vld [vmem:[#allocation2 + $0x2b8] sm:$0xff]
        %v456 = vld [vmem:[#allocation2 + $0x2c0] sm:$0xff]
        %v457 = vld [vmem:[#allocation2 + $0x2c8] sm:$0xff]
        %v458 = vld [vmem:[#allocation2 + $0x2d0] sm:$0xff]
        %v459 = vld [vmem:[#allocation2 + $0x2d8] sm:$0xff]
        %v460 = vld [vmem:[#allocation2 + $0x2e0] sm:$0xff]
        %v461 = vld [vmem:[#allocation2 + $0x2e8] sm:$0xff]
        %v462 = vld [vmem:[#allocation2 + $0x2f0] sm:$0xff]
        %v463 = vld [vmem:[#allocation2 + $0x2f8] sm:$0xff]
        %v464 = vld [vmem:[#allocation2 + $0x300] sm:$0xff]
        %v465 = vld [vmem:[#allocation2 + $0x308] sm:$0xff]
        %v466 = vld [vmem:[#allocation2 + $0x310] sm:$0xff]
        %v467 = vld [vmem:[#allocation2 + $0x318] sm:$0xff]
        %v468 = vld [vmem:[#allocation2 + $0x320] sm:$0xff]
        %v469 = vld [vmem:[#allocation2 + $0x328] sm:$0xff]
        %v470 = vld [vmem:[#allocation2 + $0x330] sm:$0xff]
        %v471 = vld [vmem:[#allocation2 + $0x338] sm:$0xff]
        %v472 = vld [vmem:[#allocation2 + $0x340] sm:$0xff]
        %v473 = vld [vmem:[#allocation2 + $0x348] sm:$0xff]
        %v474 = vld [vmem:[#allocation2 + $0x350] sm:$0xff]
        %v475 = vld [vmem:[#allocation2 + $0x358] sm:$0xff]
        %v476 = vld [vmem:[#allocation2 + $0x360] sm:$0xff]
        %v477 = vld [vmem:[#allocation2 + $0x368] sm:$0xff]
        %v478 = vld [vmem:[#allocation2 + $0x370] sm:$0xff]
        %v479 = vld [vmem:[#allocation2 + $0x378] sm:$0xff]
        %v480 = vld [vmem:[#allocation2 + $0x380] sm:$0xff]
        %v481 = vld [vmem:[#allocation2 + $0x388] sm:$0xff]
        %v482 = vld [vmem:[#allocation2 + $0x390] sm:$0xff]
        %v483 = vld [vmem:[#allocation2 + $0x398] sm:$0xff]
        %v484 = vld [vmem:[#allocation2 + $0x3a0] sm:$0xff]
        %v485 = vld [vmem:[#allocation2 + $0x3a8] sm:$0xff]
        %v486 = vld [vmem:[#allocation2 + $0x3b0] sm:$0xff]
        %v487 = vld [vmem:[#allocation2 + $0x3b8] sm:$0xff]
        %v488 = vld [vmem:[#allocation2 + $0x3c0] sm:$0xff]
        %v489 = vld [vmem:[#allocation2 + $0x3c8] sm:$0xff]
        %v490 = vld [vmem:[#allocation2 + $0x3d0] sm:$0xff]
        %v491 = vld [vmem:[#allocation2 + $0x3d8] sm:$0xff]
        %v492 = vld [vmem:[#allocation2 + $0x3e0] sm:$0xff]
        %v493 = vld [vmem:[#allocation2 + $0x3e8] sm:$0xff]
        %v494 = vld [vmem:[#allocation2 + $0x3f0] sm:$0xff]
        %v495 = vld [vmem:[#allocation2 + $0x3f8] sm:$0xff]
        %v496 = vld [vmem:[#allocation2 + $0x400] sm:$0xff]
        %v497 = vld [vmem:[#allocation2 + $0x408] sm:$0xff]
        %v498 = vld [vmem:[#allocation2 + $0x410] sm:$0xff]
        %v499 = vld [vmem:[#allocation2 + $0x418] sm:$0xff]
        %v500 = vld [vmem:[#allocation2 + $0x420] sm:$0xff]
        %v501 = vld [vmem:[#allocation2 + $0x428] sm:$0xff]
        %v502 = vld [vmem:[#allocation2 + $0x430] sm:$0xff]
        %v503 = vld [vmem:[#allocation2 + $0x438] sm:$0xff]
        %v504 = vld [vmem:[#allocation2 + $0x440] sm:$0xff]
        %v505 = vld [vmem:[#allocation2 + $0x448] sm:$0xff]
        %v506 = vld [vmem:[#allocation2 + $0x450] sm:$0xff]
        %v507 = vld [vmem:[#allocation2 + $0x458] sm:$0xff]
        %v508 = vld [vmem:[#allocation2 + $0x460] sm:$0xff]
        %v509 = vld [vmem:[#allocation2 + $0x468] sm:$0xff]
        %v510 = vld [vmem:[#allocation2 + $0x470] sm:$0xff]
        %v511 = vld [vmem:[#allocation2 + $0x478] sm:$0xff]
        %v512 = vld [vmem:[#allocation2 + $0x480] sm:$0xff]
        %v513 = vld [vmem:[#allocation2 + $0x488] sm:$0xff]
        %v514 = vld [vmem:[#allocation2 + $0x490] sm:$0xff]
        %v515 = vld [vmem:[#allocation2 + $0x498] sm:$0xff]
        %v516 = vld [vmem:[#allocation2 + $0x4a0] sm:$0xff]
        %v517 = vld [vmem:[#allocation2 + $0x4a8] sm:$0xff]
        %v518 = vld [vmem:[#allocation2 + $0x4b0] sm:$0xff]
        %v519 = vld [vmem:[#allocation2 + $0x4b8] sm:$0xff]
        %v520 = vld [vmem:[#allocation2 + $0x4c0] sm:$0xff]
        %v521 = vld [vmem:[#allocation2 + $0x4c8] sm:$0xff]
        %v522 = vld [vmem:[#allocation2 + $0x4d0] sm:$0xff]
        %v523 = vld [vmem:[#allocation2 + $0x4d8] sm:$0xff]
        %v524 = vld [vmem:[#allocation2 + $0x4e0] sm:$0xff]
        %v525 = vld [vmem:[#allocation2 + $0x4e8] sm:$0xff]
        %v526 = vld [vmem:[#allocation2 + $0x4f0] sm:$0xff]
        %v527 = vld [vmem:[#allocation2 + $0x4f8] sm:$0xff]
        %v528 = vld [vmem:[#allocation2 + $0x500] sm:$0xff]
        %v529 = vld [vmem:[#allocation2 + $0x508] sm:$0xff]
        %v530 = vld [vmem:[#allocation2 + $0x510] sm:$0xff]
        %v531 = vld [vmem:[#allocation2 + $0x518] sm:$0xff]
        %v532 = vld [vmem:[#allocation2 + $0x520] sm:$0xff]
        %v533 = vld [vmem:[#allocation2 + $0x528] sm:$0xff]
        %v534 = vld [vmem:[#allocation2 + $0x530] sm:$0xff]
        %v535 = vld [vmem:[#allocation2 + $0x538] sm:$0xff]
        %v536 = vld [vmem:[#allocation2 + $0x540] sm:$0xff]
        %v537 = vld [vmem:[#allocation2 + $0x548] sm:$0xff]
        %v538 = vld [vmem:[#allocation2 + $0x550] sm:$0xff]
        %v539 = vld [vmem:[#allocation2 + $0x558] sm:$0xff]
        %v540 = vld [vmem:[#allocation2 + $0x560] sm:$0xff]
        %v541 = vld [vmem:[#allocation2 + $0x568] sm:$0xff]
        %v542 = vld [vmem:[#allocation2 + $0x570] sm:$0xff]
        %v543 = vld [vmem:[#allocation2 + $0x578] sm:$0xff]
        %v544 = vld [vmem:[#allocation2 + $0x580] sm:$0xff]
        %v545 = vld [vmem:[#allocation2 + $0x588] sm:$0xff]
        %v546 = vld [vmem:[#allocation2 + $0x590] sm:$0xff]
        %v547 = vld [vmem:[#allocation2 + $0x598] sm:$0xff]
        %v548 = vld [vmem:[#allocation2 + $0x5a0] sm:$0xff]
        %v549 = vld [vmem:[#allocation2 + $0x5a8] sm:$0xff]
        %v550 = vld [vmem:[#allocation2 + $0x5b0] sm:$0xff]
        %v551 = vld [vmem:[#allocation2 + $0x5b8] sm:$0xff]
        %v552 = vld [vmem:[#allocation2 + $0x5c0] sm:$0xff]
        %v553 = vld [vmem:[#allocation2 + $0x5c8] sm:$0xff]
        %v554 = vld [vmem:[#allocation2 + $0x5d0] sm:$0xff]
        %v555 = vld [vmem:[#allocation2 + $0x5d8] sm:$0xff]
        %v556 = vld [vmem:[#allocation2 + $0x5e0] sm:$0xff]
        %v557 = vld [vmem:[#allocation2 + $0x5e8] sm:$0xff]
        %v558 = vld [vmem:[#allocation2 + $0x5f0] sm:$0xff]
        %v559 = vld [vmem:[#allocation2 + $0x5f8] sm:$0xff]
        %v560 = vld [vmem:[#allocation2 + $0x600] sm:$0xff]
        %v561 = vld [vmem:[#allocation2 + $0x608] sm:$0xff]
        %v562 = vld [vmem:[#allocation2 + $0x610] sm:$0xff]
        %v563 = vld [vmem:[#allocation2 + $0x618] sm:$0xff]
        %v564 = vld [vmem:[#allocation2 + $0x620] sm:$0xff]
        %v565 = vld [vmem:[#allocation2 + $0x628] sm:$0xff]
        %v566 = vld [vmem:[#allocation2 + $0x630] sm:$0xff]
        %v567 = vld [vmem:[#allocation2 + $0x638] sm:$0xff]
        %v568 = vld [vmem:[#allocation2 + $0x640] sm:$0xff]
        %v569 = vld [vmem:[#allocation2 + $0x648] sm:$0xff]
        %v570 = vld [vmem:[#allocation2 + $0x650] sm:$0xff]
        %v571 = vld [vmem:[#allocation2 + $0x658] sm:$0xff]
        %v572 = vld [vmem:[#allocation2 + $0x660] sm:$0xff]
        %v573 = vld [vmem:[#allocation2 + $0x668] sm:$0xff]
        %v574 = vld [vmem:[#allocation2 + $0x670] sm:$0xff]
        %v575 = vld [vmem:[#allocation2 + $0x678] sm:$0xff]
        %v576 = vld [vmem:[#allocation2 + $0x680] sm:$0xff]
        %v577 = vld [vmem:[#allocation2 + $0x688] sm:$0xff]
        %v578 = vld [vmem:[#allocation2 + $0x690] sm:$0xff]
        %v579 = vld [vmem:[#allocation2 + $0x698] sm:$0xff]
        %v580 = vld [vmem:[#allocation2 + $0x6a0] sm:$0xff]
        %v581 = vld [vmem:[#allocation2 + $0x6a8] sm:$0xff]
        %v582 = vld [vmem:[#allocation2 + $0x6b0] sm:$0xff]
        %v583 = vld [vmem:[#allocation2 + $0x6b8] sm:$0xff]
        %v584 = vld [vmem:[#allocation2 + $0x6c0] sm:$0xff]
        %v585 = vld [vmem:[#allocation2 + $0x6c8] sm:$0xff]
        %v586 = vld [vmem:[#allocation2 + $0x6d0] sm:$0xff]
        %v587 = vld [vmem:[#allocation2 + $0x6d8] sm:$0xff]
        %v588 = vld [vmem:[#allocation2 + $0x6e0] sm:$0xff]
        %v589 = vld [vmem:[#allocation2 + $0x6e8] sm:$0xff]
        %v590 = vld [vmem:[#allocation2 + $0x6f0] sm:$0xff]
        %v591 = vld [vmem:[#allocation2 + $0x6f8] sm:$0xff]
        %v592 = vld [vmem:[#allocation2 + $0x700] sm:$0xff]
        %v593 = vld [vmem:[#allocation2 + $0x708] sm:$0xff]
        %v594 = vld [vmem:[#allocation2 + $0x710] sm:$0xff]
        %v595 = vld [vmem:[#allocation2 + $0x718] sm:$0xff]
        %v596 = vld [vmem:[#allocation2 + $0x720] sm:$0xff]
        %v597 = vld [vmem:[#allocation2 + $0x728] sm:$0xff]
        %v598 = vld [vmem:[#allocation2 + $0x730] sm:$0xff]
        %v599 = vld [vmem:[#allocation2 + $0x738] sm:$0xff]
        %v600 = vld [vmem:[#allocation2 + $0x740] sm:$0xff]
        %v601 = vld [vmem:[#allocation2 + $0x748] sm:$0xff]
        %v602 = vld [vmem:[#allocation2 + $0x750] sm:$0xff]
        %v603 = vld [vmem:[#allocation2 + $0x758] sm:$0xff]
        %v604 = vld [vmem:[#allocation2 + $0x760] sm:$0xff]
        %v605 = vld [vmem:[#allocation2 + $0x768] sm:$0xff]
        %v606 = vld [vmem:[#allocation2 + $0x770] sm:$0xff]
        %v607 = vld [vmem:[#allocation2 + $0x778] sm:$0xff]
        %v608 = vld [vmem:[#allocation2 + $0x780] sm:$0xff]
        %v609 = vld [vmem:[#allocation2 + $0x788] sm:$0xff]
        %v610 = vld [vmem:[#allocation2 + $0x790] sm:$0xff]
        %v611 = vld [vmem:[#allocation2 + $0x798] sm:$0xff]
        %v612 = vld [vmem:[#allocation2 + $0x7a0] sm:$0xff]
        %v613 = vld [vmem:[#allocation2 + $0x7a8] sm:$0xff]
        %v614 = vld [vmem:[#allocation2 + $0x7b0] sm:$0xff]
        %v615 = vld [vmem:[#allocation2 + $0x7b8] sm:$0xff]
        %v616 = vld [vmem:[#allocation2 + $0x7c0] sm:$0xff]
        %v617 = vld [vmem:[#allocation2 + $0x7c8] sm:$0xff]
        %v618 = vld [vmem:[#allocation2 + $0x7d0] sm:$0xff]
        %v619 = vld [vmem:[#allocation2 + $0x7d8] sm:$0xff]
        %v620 = vld [vmem:[#allocation2 + $0x7e0] sm:$0xff]
        %v621 = vld [vmem:[#allocation2 + $0x7e8] sm:$0xff]
        %v622 = vld [vmem:[#allocation2 + $0x7f0] sm:$0xff]
        %v623 = vld [vmem:[#allocation2 + $0x7f8] sm:$0xff]
        %624 = vmatprep.subr.mxu0 %v369
        %625 = vmatpush1.msra.mxu0 %v368
        %626 = vmatprep.subr.mxu0 %v377
        %627 = vmatpush1.msra.mxu0 %v376
        %628 = vmatprep.subr.mxu0 %v385
        %629 = vmatpush1.msra.mxu0 %v384
        %630 = vmatprep.subr.mxu0 %v393
        %631 = vmatpush1.msra.mxu0 %v392
        %632 = vmatprep.subr.mxu0 %v401
        %633 = vmatpush1.msra.mxu0 %v400
        %634 = vmatprep.subr.mxu0 %v409
        %635 = vmatpush1.msra.mxu0 %v408
        %636 = vmatprep.subr.mxu0 %v417
        %637 = vmatpush1.msra.mxu0 %v416
        %638 = vmatprep.subr.mxu0 %v425
        %639 = vmatpush1.msra.mxu0 %v424
        %640 = vmatprep.subr.mxu0 %v433
        %641 = vmatpush1.msra.mxu0 %v432
        %642 = vmatprep.subr.mxu0 %v441
        %643 = vmatpush1.msra.mxu0 %v440
        %644 = vmatprep.subr.mxu0 %v449
        %645 = vmatpush1.msra.mxu0 %v448
        %646 = vmatprep.subr.mxu0 %v457
        %647 = vmatpush1.msra.mxu0 %v456
        %648 = vmatprep.subr.mxu0 %v465
        %649 = vmatpush1.msra.mxu0 %v464
        %650 = vmatprep.subr.mxu0 %v473
        %651 = vmatpush1.msra.mxu0 %v472
        %652 = vmatprep.subr.mxu0 %v481
        %653 = vmatpush1.msra.mxu0 %v480
        %654 = vmatprep.subr.mxu0 %v489
        %655 = vmatpush1.msra.mxu0 %v488
        %656 = vmatprep.subr.mxu0 %v497
        %657 = vmatpush1.msra.mxu0 %v496
        %658 = vmatprep.subr.mxu0 %v505
        %659 = vmatpush1.msra.mxu0 %v504
        %660 = vmatprep.subr.mxu0 %v513
        %661 = vmatpush1.msra.mxu0 %v512
        %662 = vmatprep.subr.mxu0 %v521
        %663 = vmatpush1.msra.mxu0 %v520
        %664 = vmatprep.subr.mxu0 %v529
        %665 = vmatpush1.msra.mxu0 %v528
        %666 = vmatprep.subr.mxu0 %v537
        %667 = vmatpush1.msra.mxu0 %v536
        %668 = vmatprep.subr.mxu0 %v545
        %669 = vmatpush1.msra.mxu0 %v544
        %670 = vmatprep.subr.mxu0 %v553
        %671 = vmatpush1.msra.mxu0 %v552
        %672 = vmatprep.subr.mxu0 %v561
        %673 = vmatpush1.msra.mxu0 %v560
        %674 = vmatprep.subr.mxu0 %v569
        %675 = vmatpush1.msra.mxu0 %v568
        %676 = vmatprep.subr.mxu0 %v577
        %677 = vmatpush1.msra.mxu0 %v576
        %678 = vmatprep.subr.mxu0 %v585
        %679 = vmatpush1.msra.mxu0 %v584
        %680 = vmatprep.subr.mxu0 %v593
        %681 = vmatpush1.msra.mxu0 %v592
        %682 = vmatprep.subr.mxu0 %v601
        %683 = vmatpush1.msra.mxu0 %v600
        %684 = vmatprep.subr.mxu0 %v609
        %685 = vmatpush1.msra.mxu0 %v608
        %686 = vmatprep.subr.mxu0 %v617
        %687 = vmatpush1.msra.mxu0 %v616
        %688 = vmatprep.mubr.f32.mxu0 %v366
        %689 = vmatmul.mubr.f32.gmra.mrb[0].mxu0 %v364
        %v690 = vpop.f32.mrb[0].mxu0
        %v691 = vadd.f32 0.0, %v690
        %v692 = vpop.f32.mrb[0].mxu0
        %v693 = vadd.f32 0.0, %v692
        %694 = vdwg.mxu0
        %695 = vmatprep.subr.mxu0 %v371
        %696 = vmatpush1.msra.mxu0 %v370
        %697 = vmatprep.subr.mxu0 %v379
        %698 = vmatpush1.msra.mxu0 %v378
        %699 = vmatprep.subr.mxu0 %v387
        %700 = vmatpush1.msra.mxu0 %v386
        %701 = vmatprep.subr.mxu0 %v395
        %702 = vmatpush1.msra.mxu0 %v394
        %703 = vmatprep.subr.mxu0 %v403
        %704 = vmatpush1.msra.mxu0 %v402
        %705 = vmatprep.subr.mxu0 %v411
        %706 = vmatpush1.msra.mxu0 %v410
        %707 = vmatprep.subr.mxu0 %v419
        %708 = vmatpush1.msra.mxu0 %v418
        %709 = vmatprep.subr.mxu0 %v427
        %710 = vmatpush1.msra.mxu0 %v426
        %711 = vmatprep.subr.mxu0 %v435
        %712 = vmatpush1.msra.mxu0 %v434
        %713 = vmatprep.subr.mxu0 %v443
        %714 = vmatpush1.msra.mxu0 %v442
        %715 = vmatprep.subr.mxu0 %v451
        %716 = vmatpush1.msra.mxu0 %v450
        %717 = vmatprep.subr.mxu0 %v459
        %718 = vmatpush1.msra.mxu0 %v458
        %719 = vmatprep.subr.mxu0 %v467
        %720 = vmatpush1.msra.mxu0 %v466
        %721 = vmatprep.subr.mxu0 %v475
        %722 = vmatpush1.msra.mxu0 %v474
        %723 = vmatprep.subr.mxu0 %v483
        %724 = vmatpush1.msra.mxu0 %v482
        %725 = vmatprep.subr.mxu0 %v491
        %726 = vmatpush1.msra.mxu0 %v490
        %727 = vmatprep.subr.mxu0 %v499
        %728 = vmatpush1.msra.mxu0 %v498
        %729 = vmatprep.subr.mxu0 %v507
        %730 = vmatpush1.msra.mxu0 %v506
        %731 = vmatprep.subr.mxu0 %v515
        %732 = vmatpush1.msra.mxu0 %v514
        %733 = vmatprep.subr.mxu0 %v523
        %734 = vmatpush1.msra.mxu0 %v522
        %735 = vmatprep.subr.mxu0 %v531
        %736 = vmatpush1.msra.mxu0 %v530
        %737 = vmatprep.subr.mxu0 %v539
        %738 = vmatpush1.msra.mxu0 %v538
        %739 = vmatprep.subr.mxu0 %v547
        %740 = vmatpush1.msra.mxu0 %v546
        %741 = vmatprep.subr.mxu0 %v555
        %742 = vmatpush1.msra.mxu0 %v554
        %743 = vmatprep.subr.mxu0 %v563
        %744 = vmatpush1.msra.mxu0 %v562
        %745 = vmatprep.subr.mxu0 %v571
        %746 = vmatpush1.msra.mxu0 %v570
        %747 = vmatprep.subr.mxu0 %v579
        %748 = vmatpush1.msra.mxu0 %v578
        %749 = vmatprep.subr.mxu0 %v587
        %750 = vmatpush1.msra.mxu0 %v586
        %751 = vmatprep.subr.mxu0 %v595
        %752 = vmatpush1.msra.mxu0 %v594
        %753 = vmatprep.subr.mxu0 %v603
        %754 = vmatpush1.msra.mxu0 %v602
        %755 = vmatprep.subr.mxu0 %v611
        %756 = vmatpush1.msra.mxu0 %v610
        %757 = vmatprep.subr.mxu0 %v619
        %758 = vmatpush1.msra.mxu0 %v618
        %759 = vmatprep.mubr.f32.mxu0 %v366
        %760 = vmatmul.mubr.f32.gmra.mrb[0].mxu0 %v364
        %v761 = vpop.f32.mrb[0].mxu0
        %v762 = vadd.f32 0.0, %v761
        %v763 = vpop.f32.mrb[0].mxu0
        %v764 = vadd.f32 0.0, %v763
        %765 = vdwg.mxu0
        %766 = vmatprep.subr.mxu0 %v373
        %767 = vmatpush1.msra.mxu0 %v372
        %768 = vmatprep.subr.mxu0 %v381
        %769 = vmatpush1.msra.mxu0 %v380
        %770 = vmatprep.subr.mxu0 %v389
        %771 = vmatpush1.msra.mxu0 %v388
        %772 = vmatprep.subr.mxu0 %v397
        %773 = vmatpush1.msra.mxu0 %v396
        %774 = vmatprep.subr.mxu0 %v405
        %775 = vmatpush1.msra.mxu0 %v404
        %776 = vmatprep.subr.mxu0 %v413
        %777 = vmatpush1.msra.mxu0 %v412
        %778 = vmatprep.subr.mxu0 %v421
        %779 = vmatpush1.msra.mxu0 %v420
        %780 = vmatprep.subr.mxu0 %v429
        %781 = vmatpush1.msra.mxu0 %v428
        %782 = vmatprep.subr.mxu0 %v437
        %783 = vmatpush1.msra.mxu0 %v436
        %784 = vmatprep.subr.mxu0 %v445
        %785 = vmatpush1.msra.mxu0 %v444
        %786 = vmatprep.subr.mxu0 %v453
        %787 = vmatpush1.msra.mxu0 %v452
        %788 = vmatprep.subr.mxu0 %v461
        %789 = vmatpush1.msra.mxu0 %v460
        %790 = vmatprep.subr.mxu0 %v469
        %791 = vmatpush1.msra.mxu0 %v468
        %792 = vmatprep.subr.mxu0 %v477
        %793 = vmatpush1.msra.mxu0 %v476
        %794 = vmatprep.subr.mxu0 %v485
        %795 = vmatpush1.msra.mxu0 %v484
        %796 = vmatprep.subr.mxu0 %v493
        %797 = vmatpush1.msra.mxu0 %v492
        %798 = vmatprep.subr.mxu0 %v501
        %799 = vmatpush1.msra.mxu0 %v500
        %800 = vmatprep.subr.mxu0 %v509
        %801 = vmatpush1.msra.mxu0 %v508
        %802 = vmatprep.subr.mxu0 %v517
        %803 = vmatpush1.msra.mxu0 %v516
        %804 = vmatprep.subr.mxu0 %v525
        %805 = vmatpush1.msra.mxu0 %v524
        %806 = vmatprep.subr.mxu0 %v533
        %807 = vmatpush1.msra.mxu0 %v532
        %808 = vmatprep.subr.mxu0 %v541
        %809 = vmatpush1.msra.mxu0 %v540
        %810 = vmatprep.subr.mxu0 %v549
        %811 = vmatpush1.msra.mxu0 %v548
        %812 = vmatprep.subr.mxu0 %v557
        %813 = vmatpush1.msra.mxu0 %v556
        %814 = vmatprep.subr.mxu0 %v565
        %815 = vmatpush1.msra.mxu0 %v564
        %816 = vmatprep.subr.mxu0 %v573
        %817 = vmatpush1.msra.mxu0 %v572
        %818 = vmatprep.subr.mxu0 %v581
        %819 = vmatpush1.msra.mxu0 %v580
        %820 = vmatprep.subr.mxu0 %v589
        %821 = vmatpush1.msra.mxu0 %v588
        %822 = vmatprep.subr.mxu0 %v597
        %823 = vmatpush1.msra.mxu0 %v596
        %824 = vmatprep.subr.mxu0 %v605
        %825 = vmatpush1.msra.mxu0 %v604
        %826 = vmatprep.subr.mxu0 %v613
        %827 = vmatpush1.msra.mxu0 %v612
        %828 = vmatprep.subr.mxu0 %v621
        %829 = vmatpush1.msra.mxu0 %v620
        %830 = vmatprep.mubr.f32.mxu0 %v366
        %831 = vmatmul.mubr.f32.gmra.mrb[0].mxu0 %v364
        %v832 = vpop.f32.mrb[0].mxu0
        %v833 = vadd.f32 0.0, %v832
        %v834 = vpop.f32.mrb[0].mxu0
        %v835 = vadd.f32 0.0, %v834
        %836 = vdwg.mxu0
        %837 = vmatprep.subr.mxu0 %v375
        %838 = vmatpush1.msra.mxu0 %v374
        %839 = vmatprep.subr.mxu0 %v383
        %840 = vmatpush1.msra.mxu0 %v382
        %841 = vmatprep.subr.mxu0 %v391
        %842 = vmatpush1.msra.mxu0 %v390
        %843 = vmatprep.subr.mxu0 %v399
        %844 = vmatpush1.msra.mxu0 %v398
        %845 = vmatprep.subr.mxu0 %v407
        %846 = vmatpush1.msra.mxu0 %v406
        %847 = vmatprep.subr.mxu0 %v415
        %848 = vmatpush1.msra.mxu0 %v414
        %849 = vmatprep.subr.mxu0 %v423
        %850 = vmatpush1.msra.mxu0 %v422
        %851 = vmatprep.subr.mxu0 %v431
        %852 = vmatpush1.msra.mxu0 %v430
        %853 = vmatprep.subr.mxu0 %v439
        %854 = vmatpush1.msra.mxu0 %v438
        %855 = vmatprep.subr.mxu0 %v447
        %856 = vmatpush1.msra.mxu0 %v446
        %857 = vmatprep.subr.mxu0 %v455
        %858 = vmatpush1.msra.mxu0 %v454
        %859 = vmatprep.subr.mxu0 %v463
        %860 = vmatpush1.msra.mxu0 %v462
        %861 = vmatprep.subr.mxu0 %v471
        %862 = vmatpush1.msra.mxu0 %v470
        %863 = vmatprep.subr.mxu0 %v479
        %864 = vmatpush1.msra.mxu0 %v478
        %865 = vmatprep.subr.mxu0 %v487
        %866 = vmatpush1.msra.mxu0 %v486
        %867 = vmatprep.subr.mxu0 %v495
        %868 = vmatpush1.msra.mxu0 %v494
        %869 = vmatprep.subr.mxu0 %v503
        %870 = vmatpush1.msra.mxu0 %v502
        %871 = vmatprep.subr.mxu0 %v511
        %872 = vmatpush1.msra.mxu0 %v510
        %873 = vmatprep.subr.mxu0 %v519
        %874 = vmatpush1.msra.mxu0 %v518
        %875 = vmatprep.subr.mxu0 %v527
        %876 = vmatpush1.msra.mxu0 %v526
        %877 = vmatprep.subr.mxu0 %v535
        %878 = vmatpush1.msra.mxu0 %v534
        %879 = vmatprep.subr.mxu0 %v543
        %880 = vmatpush1.msra.mxu0 %v542
        %881 = vmatprep.subr.mxu0 %v551
        %882 = vmatpush1.msra.mxu0 %v550
        %883 = vmatprep.subr.mxu0 %v559
        %884 = vmatpush1.msra.mxu0 %v558
        %885 = vmatprep.subr.mxu0 %v567
        %886 = vmatpush1.msra.mxu0 %v566
        %887 = vmatprep.subr.mxu0 %v575
        %888 = vmatpush1.msra.mxu0 %v574
        %889 = vmatprep.subr.mxu0 %v583
        %890 = vmatpush1.msra.mxu0 %v582
        %891 = vmatprep.subr.mxu0 %v591
        %892 = vmatpush1.msra.mxu0 %v590
        %893 = vmatprep.subr.mxu0 %v599
        %894 = vmatpush1.msra.mxu0 %v598
        %895 = vmatprep.subr.mxu0 %v607
        %896 = vmatpush1.msra.mxu0 %v606
        %897 = vmatprep.subr.mxu0 %v615
        %898 = vmatpush1.msra.mxu0 %v614
        %899 = vmatprep.subr.mxu0 %v623
        %900 = vmatpush1.msra.mxu0 %v622
        %901 = vmatprep.mubr.f32.mxu0 %v366
        %902 = vmatmul.mubr.f32.gmra.mrb[0].mxu0 %v364
        %v903 = vpop.f32.mrb[0].mxu0
        %v904 = vadd.f32 0.0, %v903
        %v905 = vpop.f32.mrb[0].mxu0
        %v906 = vadd.f32 0.0, %v905
        %907 = vdwg.mxu0
        %908 = vst [vmem:[%s262] sm:$0xff] %v691
        %909 = vst [vmem:[%s262 + $0x8] sm:$0xff] %v693
        %910 = vst [vmem:[%s262 + $0x10] sm:$0xff] %v762
        %911 = vst [vmem:[%s262 + $0x18] sm:$0xff] %v764
        %912 = vst [vmem:[%s262 + $0x20] sm:$0xff] %v833
        %913 = vst [vmem:[%s262 + $0x28] sm:$0xff] %v835
        %914 = vst [vmem:[%s262 + $0x30] sm:$0xff] %v904
        %915 = vst [vmem:[%s262 + $0x38] sm:$0xff] %v906
        %s916 = sand.u32 %s154, 1
        %s917 = scalar_lea.sflag [#allocation4], %s916
        %s918 = sand.u32 %s154, 1
        %s919 = smul.addr %s918, 64
        %s920 = scalar_lea.vmem [#allocation5], %s919
        // Predicated region
        $region41: #{tpu_custom_call.1} parent=35 // pred_check
          %p921 = pneg %p164
        $region42: #{tpu_custom_call.1} parent=35 // pred_check_branch
          %923 = sbr.rel (%p921) target = $region44
        $region43: #{tpu_custom_call.1} parent=35 // pred_region
          %s924 = smul.u32 8, %s26
          %s926 = ssub.s32 1024, 1024
          %927 = vsyncadd %s917, %s926
          %s928 = smul.addr %s24, 8
          %s929 = sadd.s32 %s924, %s928
          %s930 = smul.addr %s25, 8
          %s931 = sadd.s32 %s929, %s930
          %s932 = smul.addr %s931, 128
          %s933 = scalar_lea.hbm %s4, %s932
          %s935 = sshll.u32 %s920, 4
          %s936 = int_to_ptr.vmem [resolvable:$true] %s935
          %938 = dma.vmem_to_hbm [thread:$0]  %s936, 1024, %s933, %s917
        $region44: #{tpu_custom_call.1} parent=35 // pred_fallthru
          _
      $region36: #{tpu_custom_call.1} parent=5 // pred_fallthru
        _
      %p939 = scmp.le.s32.totalorder 2, %s14
      // Predicated region
      $region45: #{tpu_custom_call.1} parent=5 // pred_check
        %p940 = pneg %p939
      $region46: #{tpu_custom_call.1} parent=5 // pred_check_branch
        %942 = sbr.rel (%p940) target = $region48
      $region47: #{tpu_custom_call.1} parent=5 // pred_region
        %s943 = ssub.s32 %s14, 2
        // Predicated region
        $region49: #{tpu_custom_call.1} parent=47 // pred_check
          %p944 = pneg %p170
        $region50: #{tpu_custom_call.1} parent=47 // pred_check_branch
          %946 = sbr.rel (%p944) target = $region52
        $region51: #{tpu_custom_call.1} parent=47 // pred_region
          %s947 = sand.u32 %s155, 1
          %s948 = scalar_lea.sflag [#allocation4], %s947
          %s949 = sand.u32 %s155, 1
          %s950 = smul.addr %s949, 64
          %s951 = scalar_lea.vmem [#allocation5], %s950
          %952 = dma.done %s948, 1024
        $region52: #{tpu_custom_call.1} parent=47 // pred_fallthru
          _
      $region48: #{tpu_custom_call.1} parent=5 // pred_fallthru
        _
    $region6: #{tpu_custom_call.1} parent=1 // loop_footer
      %s18 = sadd.s32 1, %s14
    $region7: #{tpu_custom_call.1} parent=1 // loop_footer_branch
      %13 = sbr.rel target = $region3
    $region8: #{tpu_custom_call.1} parent=1 // loop_exit
      _
    %953 = vsyncpa [#allocation3], 1
    %s954 = scalar_lea.sflag [#allocation3], 1
    %955 = vsyncpa %s954, 1
    %956 = vsyncpa [#allocation4], 1
    %s957 = scalar_lea.sflag [#allocation4], 1
    %958 = vsyncpa %s957, 1

</llo_original>
